<compile_context>
chip_gen: v7x
topology: tpu7x:2x2x1
jax: 0.10.0
libtpu: 0.0.40
codegen_flags: <defaults>
</compile_context>

<pallas_src>
import functools

import jax
import jax.numpy as jnp
from jax.experimental import pallas as pl
from jax.experimental.pallas import tpu as pltpu

_PAIR_EPS = 1e-6  # F.pairwise_distance default eps (added to the *difference*)


def _cdiv(a, b):
    return -(-a // b)


def _round_up(x, m):
    return ((x + m - 1) // m) * m


# ---------------------------------------------------------------------------
# Kernel: one row-block of (output1, output2, label) per grid step.
# Grid = (core_split, row_blocks_per_core); the per-core partial sum of
#   label*d^2 + (1-label)*relu(margin-d)^2 + reg_weight*(||x1|| + ||x2||)
# is accumulated directly into that core's lane-dense output block.
# ---------------------------------------------------------------------------
def _contrastive_kernel(x1_ref, x2_ref, lab_ref, out_ref, *,
                        margin, reg_weight, batch, block_rows,
                        blocks_total, blocks_per_core):
    c = pl.program_id(0)   # "parallel" axis: half of the batch per TensorCore
    j = pl.program_id(1)   # "arbitrary" reduction axis: row-blocks of this half

    @pl.when(j == 0)
    def _():
        out_ref[...] = jnp.zeros_like(out_ref)

    # Native-dtype DMA (bf16/f32); all math in f32 registers.
    x1 = x1_ref[...].astype(jnp.float32)      # [tb, D]
    x2 = x2_ref[...].astype(jnp.float32)      # [tb, D]
    lab = lab_ref[...]                        # [tb, 1] f32

    # Rows this grid step actually owns.  The index_map clamps the block index
    # so the DMA never starts past the array; `owner` masks the duplicated
    # (clamped) block, `row < batch` masks the ragged tail of the last block.
    blk = c * blocks_per_core + j
    owner = blk < blocks_total
    blk_clamped = jnp.minimum(blk, blocks_total - 1)
    row = blk_clamped * block_rows + jax.lax.broadcasted_iota(
        jnp.int32, (block_rows, 1), 0)
    valid = jnp.logical_and(owner, row < batch)              # [tb, 1] bool

    # F.pairwise_distance(p=2, eps=1e-6): eps is added to the difference
    # (matches torch semantics exactly; do not "fix").
    diff = x1 - x2 + _PAIR_EPS
    d2 = jnp.sum(diff * diff, axis=1, keepdims=True)          # [tb, 1]
    dist = jnp.sqrt(d2)
    hinge = jnp.maximum(margin - dist, 0.0)
    # label*dist^2 + (1-label)*relu(margin-dist)^2   (d2 == dist^2 to 1 ulp)
    loss_row = lab * d2 + (1.0 - lab) * hinge * hinge          # [tb, 1]

    n1 = jnp.sqrt(jnp.sum(x1 * x1, axis=1, keepdims=True))     # [tb, 1]
    n2 = jnp.sqrt(jnp.sum(x2 * x2, axis=1, keepdims=True))     # [tb, 1]

    contrib = loss_row + reg_weight * (n1 + n2)
    # where (not multiply): garbage in masked rows may be Inf/NaN.
    contrib = jnp.where(valid, contrib, 0.0)

    # (1,1) partial sum broadcasts into the resident (1, 8, 128) accumulator.
    out_ref[...] += jnp.sum(contrib, axis=0, keepdims=True)


# ---------------------------------------------------------------------------
# Wrapper
# ---------------------------------------------------------------------------
@functools.partial(jax.jit, static_argnames=("margin", "reg_weight", "block_rows"))
def contrastive_loss(output1, output2, label, *,
                     margin=1.0, reg_weight=0.01, block_rows=None):
    b, d = output1.shape
    lab = label.astype(jnp.float32).reshape(b, 1)
    itemsize = jnp.dtype(output1.dtype).itemsize

    # ---- row-tile selection -------------------------------------------------
    if block_rows is None:
        # ~12 MiB for the double-buffered embedding tiles (2 arrays x 2 bufs).
        budget = 12 * 1024 * 1024
        tb = budget // (4 * d * itemsize)
        tb = max(8, min(2048, (tb // 8) * 8))
    else:
        tb = max(8, _round_up(int(block_rows), 8))
    # A tile never needs to exceed one core's share of the batch.
    tb = min(tb, _round_up(_cdiv(b, 2), 8))

    blocks_total = _cdiv(b, tb)
    n_split = 2 if blocks_total >= 2 else 1        # use both TensorCores on v7x
    blocks_per_core = _cdiv(blocks_total, n_split)
    grid = (n_split, blocks_per_core)

    kernel = functools.partial(
        _contrastive_kernel,
        margin=float(margin), reg_weight=float(reg_weight),
        batch=int(b), block_rows=int(tb),
        blocks_total=int(blocks_total), blocks_per_core=int(blocks_per_core))

    def row_block(c, j):
        # Clamp so a fully out-of-range block (odd block count split over two
        # cores) re-reads the last valid block; the kernel masks it to zero.
        return (jnp.minimum(c * blocks_per_core + j, blocks_total - 1), 0)

    partials = pl.pallas_call(
        kernel,
        out_shape=jax.ShapeDtypeStruct((n_split, 8, 128), jnp.float32),
        grid=grid,
        in_specs=[
            pl.BlockSpec((tb, d), row_block),      # output1 row-block (native dtype)
            pl.BlockSpec((tb, d), row_block),      # output2 row-block (native dtype)
            pl.BlockSpec((tb, 1), row_block),      # label row-block (f32)
        ],
        out_specs=pl.BlockSpec((1, 8, 128), lambda c, j: (c, 0, 0)),
        compiler_params=pltpu.CompilerParams(
            dimension_semantics=("parallel", "arbitrary"),
            vmem_limit_bytes=32 * 1024 * 1024,     # lets v5e take the big tiles
        ),
    )(output1, output2, lab)

    # Per-core partial sums -> mean.  reg_weight is already folded in per row,
    # and both means divide by the same batch size.
    return jnp.sum(partials[:, 0, 0]) / b


# ---------------------------------------------------------------------------
# Pure-JAX reference (mirrors the PyTorch forward exactly)
# ---------------------------------------------------------------------------
def _reference(o1, o2, lab, margin=1.0, reg_weight=0.01):
    o1 = o1.astype(jnp.float32)
    o2 = o2.astype(jnp.float32)
    diff = o1 - o2 + _PAIR_EPS
    dist = jnp.sqrt(jnp.sum(diff * diff, axis=1))
    loss = lab * dist**2 + (1.0 - lab) * jnp.maximum(margin - dist, 0.0)**2
    reg = (jnp.linalg.norm(o1, axis=1).mean()
           + jnp.linalg.norm(o2, axis=1).mean())
    return loss.mean() + reg_weight * reg


if __name__ == "__main__":
    key = jax.random.PRNGKey(0)
    k1, k2, k3, k4, k5, k6 = jax.random.split(key, 6)

    # Case 1: bf16 embeddings (native-dtype DMA path), auto tile, ragged batch.
    B1, D1 = 50, 256
    o1 = jax.random.normal(k1, (B1, D1), jnp.bfloat16)
    o2 = jax.random.normal(k2, (B1, D1), jnp.bfloat16)
    y1 = jax.random.bernoulli(k3, 0.5, (B1,)).astype(jnp.float32)
    got1 = contrastive_loss(o1, o2, y1, margin=1.0, reg_weight=0.01)
    jax.block_until_ready(got1)
    want1 = _reference(o1, o2, y1, margin=1.0, reg_weight=0.01)
    assert got1.shape == () and got1.dtype == jnp.float32
    assert jnp.allclose(got1, want1, rtol=1e-4, atol=1e-4), (got1, want1)

    # Case 2: f32 embeddings, forced small tile -> odd block count exercises
    # both the clamped/duplicated-block mask and the ragged-tail mask.
    B2, D2 = 70, 128
    p1 = jax.random.normal(k4, (B2, D2), jnp.float32)
    p2 = jax.random.normal(k5, (B2, D2), jnp.float32)
    y2 = jax.random.bernoulli(k6, 0.5, (B2,)).astype(jnp.float32)
    got2 = contrastive_loss(p1, p2, y2, margin=1.0, reg_weight=0.01,
                            block_rows=16)
    jax.block_until_ready(got2)
    want2 = _reference(p1, p2, y2, margin=1.0, reg_weight=0.01)
    assert jnp.allclose(got2, want2, rtol=1e-4, atol=1e-4), (got2, want2)

    print("KERNEL_OK")
</pallas_src>

<mosaic_0001>
module attributes {stable_mosaic.version = 11 : i64} {
  func.func @_contrastive_kernel(%arg0: i32, %arg1: i32, %arg2: memref<32x256xbf16, #tpu.memory_space<vmem>>, %arg3: memref<32x256xbf16, #tpu.memory_space<vmem>>, %arg4: memref<32x1xf32, #tpu.memory_space<vmem>>, %arg5: memref<1x8x128xf32, #tpu.memory_space<vmem>>) attributes {dimension_semantics = [#tpu.dimension_semantics<parallel>, #tpu.dimension_semantics<arbitrary>], iteration_bounds = array<i64: 2, 1>, scalar_prefetch = 0 : i64, scratch_operands = 0 : i64, tpu.core_type = #tpu.core_type<tc>, window_params = [{transform_indices = @transform_0, window_bounds = array<i64: 32, 256>}, {transform_indices = @transform_1, window_bounds = array<i64: 32, 256>}, {transform_indices = @transform_2, window_bounds = array<i64: 32, 1>}, {transform_indices = @transform_3, window_bounds = array<i64: 1, 8, 128>}]} {
    %c0_i32 = arith.constant 0 : i32
    %0 = arith.cmpi eq, %arg1, %c0_i32 : i32
    %1 = arith.extui %0 : i1 to i32
    %c0_i32_0 = arith.constant 0 : i32
    %2 = arith.cmpi ne, %1, %c0_i32_0 : i32
    scf.if %2 {
      %cst_22 = arith.constant 0.000000e+00 : f32
      %58 = vector.broadcast %cst_22 : f32 to vector<1x8x128xf32>
      %c0_23 = arith.constant 0 : index
      %c0_24 = arith.constant 0 : index
      %c0_25 = arith.constant 0 : index
      %59 = vector.load %arg5[%c0_23, %c0_24, %c0_25] : memref<1x8x128xf32, #tpu.memory_space<vmem>>, vector<1x8x128xf32>
      tpu.vector_store %arg5[%c0_23, %c0_24, %c0_25], %58 {strides = array<i32>} : memref<1x8x128xf32, #tpu.memory_space<vmem>>, vector<1x8x128xf32>,
    } else {
    }
    %c0 = arith.constant 0 : index
    %c0_1 = arith.constant 0 : index
    %3 = vector.load %arg2[%c0, %c0_1] : memref<32x256xbf16, #tpu.memory_space<vmem>>, vector<32x256xbf16>
    %4 = arith.extf %3 : vector<32x256xbf16> to vector<32x256xf32>
    %c0_2 = arith.constant 0 : index
    %c0_3 = arith.constant 0 : index
    %5 = vector.load %arg3[%c0_2, %c0_3] : memref<32x256xbf16, #tpu.memory_space<vmem>>, vector<32x256xbf16>
    %6 = arith.extf %5 : vector<32x256xbf16> to vector<32x256xf32>
    %c0_4 = arith.constant 0 : index
    %c0_5 = arith.constant 0 : index
    %7 = vector.load %arg4[%c0_4, %c0_5] : memref<32x1xf32, #tpu.memory_space<vmem>>, vector<32x1xf32>
    %c1_i32 = arith.constant 1 : i32
    %8 = arith.muli %arg0, %c1_i32 : i32
    %9 = arith.addi %8, %arg1 : i32
    %c2_i32 = arith.constant 2 : i32
    %10 = arith.cmpi slt, %9, %c2_i32 : i32
    %c1_i32_6 = arith.constant 1 : i32
    %11 = arith.minsi %9, %c1_i32_6 : i32
    %c32_i32 = arith.constant 32 : i32
    %12 = arith.muli %11, %c32_i32 : i32
    %13 = tpu.iota {dimensions = array<i32: 0>} : vector<32x1xi32>
    %14 = vector.broadcast %12 : i32 to vector<32x1xi32>
    %15 = arith.addi %14, %13 : vector<32x1xi32>
    %c50_i32 = arith.constant 50 : i32
    %16 = vector.broadcast %c50_i32 : i32 to vector<32x1xi32>
    %17 = arith.cmpi slt, %15, %16 : vector<32x1xi32>
    %18 = vector.broadcast %10 : i1 to vector<32x1xi1>
    %19 = arith.andi %18, %17 : vector<32x1xi1>
    %20 = arith.subf %4, %6 : vector<32x256xf32>
    %cst = arith.constant 9.99999997E-7 : f32
    %21 = vector.broadcast %cst : f32 to vector<32x256xf32>
    %22 = arith.addf %20, %21 : vector<32x256xf32>
    %23 = arith.mulf %22, %22 : vector<32x256xf32>
    %cst_7 = arith.constant dense<0.000000e+00> : vector<32xf32>
    %24 = vector.multi_reduction <add>, %23, %cst_7 [1] : vector<32x256xf32> to vector<32xf32>
    %25 = vector.shape_cast %24 : vector<32xf32> to vector<32x1xf32>
    %26 = math.sqrt %25 : vector<32x1xf32>
    %cst_8 = arith.constant 1.000000e+00 : f32
    %27 = vector.broadcast %cst_8 : f32 to vector<32x1xf32>
    %28 = arith.subf %27, %26 : vector<32x1xf32>
    %cst_9 = arith.constant 0.000000e+00 : f32
    %29 = vector.broadcast %cst_9 : f32 to vector<32x1xf32>
    %30 = arith.maximumf %28, %29 : vector<32x1xf32>
    %31 = arith.mulf %7, %25 : vector<32x1xf32>
    %cst_10 = arith.constant 1.000000e+00 : f32
    %32 = vector.broadcast %cst_10 : f32 to vector<32x1xf32>
    %33 = arith.subf %32, %7 : vector<32x1xf32>
    %34 = arith.mulf %33, %30 : vector<32x1xf32>
    %35 = arith.mulf %34, %30 : vector<32x1xf32>
    %36 = arith.addf %31, %35 : vector<32x1xf32>
    %37 = arith.mulf %4, %4 : vector<32x256xf32>
    %cst_11 = arith.constant dense<0.000000e+00> : vector<32xf32>
    %38 = vector.multi_reduction <add>, %37, %cst_11 [1] : vector<32x256xf32> to vector<32xf32>
    %39 = vector.shape_cast %38 : vector<32xf32> to vector<32x1xf32>
    %40 = math.sqrt %39 : vector<32x1xf32>
    %41 = arith.mulf %6, %6 : vector<32x256xf32>
    %cst_12 = arith.constant dense<0.000000e+00> : vector<32xf32>
    %42 = vector.multi_reduction <add>, %41, %cst_12 [1] : vector<32x256xf32> to vector<32xf32>
    %43 = vector.shape_cast %42 : vector<32xf32> to vector<32x1xf32>
    %44 = math.sqrt %43 : vector<32x1xf32>
    %45 = arith.addf %40, %44 : vector<32x1xf32>
    %cst_13 = arith.constant 0.00999999977 : f32
    %46 = vector.broadcast %cst_13 : f32 to vector<32x1xf32>
    %47 = arith.mulf %46, %45 : vector<32x1xf32>
    %48 = arith.addf %36, %47 : vector<32x1xf32>
    %cst_14 = arith.constant 0.000000e+00 : f32
    %49 = vector.broadcast %cst_14 : f32 to vector<32x1xf32>
    %50 = arith.select %19, %48, %49 : vector<32x1xi1>, vector<32x1xf32>
    %c0_15 = arith.constant 0 : index
    %c0_16 = arith.constant 0 : index
    %c0_17 = arith.constant 0 : index
    %51 = vector.load %arg5[%c0_15, %c0_16, %c0_17] : memref<1x8x128xf32, #tpu.memory_space<vmem>>, vector<1x8x128xf32>
    %cst_18 = arith.constant dense<0.000000e+00> : vector<1xf32>
    %52 = vector.multi_reduction <add>, %50, %cst_18 [0] : vector<32x1xf32> to vector<1xf32>
    %53 = vector.shape_cast %52 : vector<1xf32> to vector<1x1xf32>
    %54 = vector.shape_cast %53 : vector<1x1xf32> to vector<1x1x1xf32>
    %55 = vector.broadcast %54 : vector<1x1x1xf32> to vector<1x8x128xf32>
    %56 = arith.addf %51, %55 : vector<1x8x128xf32>
    %c0_19 = arith.constant 0 : index
    %c0_20 = arith.constant 0 : index
    %c0_21 = arith.constant 0 : index
    %57 = vector.load %arg5[%c0_19, %c0_20, %c0_21] : memref<1x8x128xf32, #tpu.memory_space<vmem>>, vector<1x8x128xf32>
    tpu.vector_store %arg5[%c0_19, %c0_20, %c0_21], %56 {strides = array<i32>} : memref<1x8x128xf32, #tpu.memory_space<vmem>>, vector<1x8x128xf32>,
    return
  }
  func.func @transform_0(%arg0: i32, %arg1: i32) -> (i32, i32) {
    %c1_i32 = arith.constant 1 : i32
    %0 = arith.muli %arg0, %c1_i32 : i32
    %1 = arith.addi %0, %arg1 : i32
    %c1_i32_0 = arith.constant 1 : i32
    %2 = arith.minsi %1, %c1_i32_0 : i32
    %c0_i32 = arith.constant 0 : i32
    %c0_i32_1 = arith.constant 0 : i32
    return %2, %c0_i32 : i32, i32
  }
  func.func @transform_1(%arg0: i32, %arg1: i32) -> (i32, i32) {
    %c1_i32 = arith.constant 1 : i32
    %0 = arith.muli %arg0, %c1_i32 : i32
    %1 = arith.addi %0, %arg1 : i32
    %c1_i32_0 = arith.constant 1 : i32
    %2 = arith.minsi %1, %c1_i32_0 : i32
    %c0_i32 = arith.constant 0 : i32
    %c0_i32_1 = arith.constant 0 : i32
    return %2, %c0_i32 : i32, i32
  }
  func.func @transform_2(%arg0: i32, %arg1: i32) -> (i32, i32) {
    %c1_i32 = arith.constant 1 : i32
    %0 = arith.muli %arg0, %c1_i32 : i32
    %1 = arith.addi %0, %arg1 : i32
    %c1_i32_0 = arith.constant 1 : i32
    %2 = arith.minsi %1, %c1_i32_0 : i32
    %c0_i32 = arith.constant 0 : i32
    %c0_i32_1 = arith.constant 0 : i32
    return %2, %c0_i32 : i32, i32
  }
  func.func @transform_3(%arg0: i32, %arg1: i32) -> (i32, i32, i32) {
    %c0_i32 = arith.constant 0 : i32
    %c0_i32_0 = arith.constant 0 : i32
    %c0_i32_1 = arith.constant 0 : i32
    return %arg0, %c0_i32, %c0_i32_0 : i32, i32, i32
  }
}

</mosaic_0001>

<llo_original>
// kernel: contrastive_loss.1
$region0: #{contrastive_loss.1}
  #allocation0 [shape = 'u32[]', space=smem, size = 0x4, offset = 0x4, fixed_abs, tag = 'smem constant byte address 0x4 - core index']
  #allocation1 [shape = 'u32[144,128]{1,0:T(1,128)}', space=vmem, size = 0x12000, scoped, tag = 'internal scratch']
  %s0 = inlined_call_operand.vmem [shape: bf16[50,256], index: 0, kind: input, shape index: {}]
  %s1 = inlined_call_operand.hbm [shape: bf16[50,256], index: 1, kind: input, shape index: {}]
  %s2 = inlined_call_operand.vmem [shape: f32[50,1], index: 2, kind: input, shape index: {}]
  %s3 = inlined_call_operand.vmem [shape: f32[2,8,128], index: 3, kind: output, shape index: {}]
  %s4 = sld [smem:[#allocation0]]
  $region53: #{contrastive_loss.1} parent=0
    _
  %s6 = ssub.s32 1, %s4
  %s7 = scalar_select 0, %s6, %s4
  $region1: #{contrastive_loss.1} parent=0
    #allocation2 [shape = 'u8[32768]{0}', space=vmem, size = 0x8000, scoped, tag = 'input window, operand 1']
    #allocation3 [shape = 's32[2]{0}', space=sflag, size = 0x8, scoped, tag = 'scoped memory for contrastive_loss.1']
    %8 = vsyncpa [#allocation3], 0
    %s9 = scalar_lea.sflag [#allocation3], 1
    %10 = vsyncpa %s9, 0
    loop: start=0, step=1, limit=4
    $region2: #{contrastive_loss.1} parent=1 // loop_pre_header
      _
    $region3: #{contrastive_loss.1} parent=1 // loop_header
      %s12 = sphi 0, %s16
      %p13 = scmp.ge.s32.totalorder %s12, 4
      %s19 = sphi 0, %s31
      %s20 = sphi 0, %s27
      %s21 = sphi 0, %s19
      %s22 = sphi 0, %s20
      %s23 = sphi 0, %s21
      %s24 = sphi 0, %s22
      %s40 = sphi 0, %s42
      %s43 = sphi 0, %s40
      %s44 = sphi 0, %s43
      %s60 = sphi 0, %s44
      %s72 = sphi 0, %s74
      %s75 = sphi 0, %s72
      %s76 = sphi 0, %s75
      %s92 = sphi 0, %s76
      %s104 = sphi 0, %s106
      %s107 = sphi 0, %s104
      %s108 = sphi 0, %s107
      %s124 = sphi 0, %s108
      %s130 = sphi 0, %s132
      %s133 = sphi 0, %s130
      %s134 = sphi 0, %s133
      %s150 = sphi 0, %s134
    $region4: #{contrastive_loss.1} parent=1 // loop_header_branch
      %15 = sbr.rel (%p13) target = $region8
    $region5: #{contrastive_loss.1} parent=1 // loop_body
      %s17 = ssub.s32 %s12, 1
      %s18 = ssub.s32 %s12, 2
      %s25 = sadd.s32 1, %s20
      %p26 = scmp.ge.s32.totalorder %s25, 1
      %s27 = scalar_select %p26, 0, %s25
      %s28 = sadd.s32 1, %s19
      %s29 = scalar_select %p26, %s28, %s19
      %p30 = scmp.ge.s32.totalorder %s29, 2
      %s31 = scalar_select %p30, 0, %s29
      %s32 = sadd.s32 %s19, %s20
      %p33 = scmp.lt.s32.totalorder %s32, 1
      %s34 = scalar_select %p33, %s32, 1
      %s35 = sadd.s32 %s31, %s27
      %p36 = scmp.lt.s32.totalorder %s35, 1
      %s37 = scalar_select %p36, %s35, 1
      %s38 = ssub.s32 %s34, %s37
      %p39 = scmp.eq.s32.totalorder %s38, 0
      %s41 = sadd.s32 %s40, 1
      %s42 = scalar_select %p39, %s40, %s41
      %p45 = pneg %p39
      %p46 = scmp.eq.s32.totalorder %s12, 1
      %p47 = por %p45, %p46
      %p48 = scmp.ne.s32.totalorder %s40, %s43
      %p49 = scmp.eq.s32.totalorder %s12, 0
      %p50 = por %p48, %p49
      %p51 = scmp.ne.s32.totalorder %s40, %s43
      %p52 = scmp.eq.s32.totalorder %s17, 1
      %p53 = por %p51, %p52
      %p54 = scmp.ne.s32.totalorder %s43, %s44
      %p55 = scmp.eq.s32.totalorder %s17, 0
      %p56 = por %p54, %p55
      %p57 = scmp.ne.s32.totalorder %s43, %s44
      %p58 = scmp.eq.s32.totalorder %s18, 1
      %p59 = por %p57, %p58
      %p61 = scmp.ne.s32.totalorder %s44, %s60
      %p62 = scmp.eq.s32.totalorder %s18, 0
      %p63 = por %p61, %p62
      %s64 = sadd.s32 %s19, %s20
      %p65 = scmp.lt.s32.totalorder %s64, 1
      %s66 = scalar_select %p65, %s64, 1
      %s67 = sadd.s32 %s31, %s27
      %p68 = scmp.lt.s32.totalorder %s67, 1
      %s69 = scalar_select %p68, %s67, 1
      %s70 = ssub.s32 %s66, %s69
      %p71 = scmp.eq.s32.totalorder %s70, 0
      %s73 = sadd.s32 %s72, 1
      %s74 = scalar_select %p71, %s72, %s73
      %p77 = pneg %p71
      %p78 = scmp.eq.s32.totalorder %s12, 1
      %p79 = por %p77, %p78
      %p80 = scmp.ne.s32.totalorder %s72, %s75
      %p81 = scmp.eq.s32.totalorder %s12, 0
      %p82 = por %p80, %p81
      %p83 = scmp.ne.s32.totalorder %s72, %s75
      %p84 = scmp.eq.s32.totalorder %s17, 1
      %p85 = por %p83, %p84
      %p86 = scmp.ne.s32.totalorder %s75, %s76
      %p87 = scmp.eq.s32.totalorder %s17, 0
      %p88 = por %p86, %p87
      %p89 = scmp.ne.s32.totalorder %s75, %s76
      %p90 = scmp.eq.s32.totalorder %s18, 1
      %p91 = por %p89, %p90
      %p93 = scmp.ne.s32.totalorder %s76, %s92
      %p94 = scmp.eq.s32.totalorder %s18, 0
      %p95 = por %p93, %p94
      %s96 = sadd.s32 %s19, %s20
      %p97 = scmp.lt.s32.totalorder %s96, 1
      %s98 = scalar_select %p97, %s96, 1
      %s99 = sadd.s32 %s31, %s27
      %p100 = scmp.lt.s32.totalorder %s99, 1
      %s101 = scalar_select %p100, %s99, 1
      %s102 = ssub.s32 %s98, %s101
      %p103 = scmp.eq.s32.totalorder %s102, 0
      %s105 = sadd.s32 %s104, 1
      %s106 = scalar_select %p103, %s104, %s105
      %p109 = pneg %p103
      %p110 = scmp.eq.s32.totalorder %s12, 1
      %p111 = por %p109, %p110
      %p112 = scmp.ne.s32.totalorder %s104, %s107
      %p113 = scmp.eq.s32.totalorder %s12, 0
      %p114 = por %p112, %p113
      %p115 = scmp.ne.s32.totalorder %s104, %s107
      %p116 = scmp.eq.s32.totalorder %s17, 1
      %p117 = por %p115, %p116
      %p118 = scmp.ne.s32.totalorder %s107, %s108
      %p119 = scmp.eq.s32.totalorder %s17, 0
      %p120 = por %p118, %p119
      %p121 = scmp.ne.s32.totalorder %s107, %s108
      %p122 = scmp.eq.s32.totalorder %s18, 1
      %p123 = por %p121, %p122
      %p125 = scmp.ne.s32.totalorder %s108, %s124
      %p126 = scmp.eq.s32.totalorder %s18, 0
      %p127 = por %p125, %p126
      %s128 = ssub.s32 %s19, %s31
      %p129 = scmp.eq.s32.totalorder %s128, 0
      %s131 = sadd.s32 %s130, 1
      %s132 = scalar_select %p129, %s130, %s131
      %p135 = pneg %p129
      %p136 = scmp.eq.s32.totalorder %s12, 1
      %p137 = por %p135, %p136
      %p138 = scmp.ne.s32.totalorder %s130, %s133
      %p139 = scmp.eq.s32.totalorder %s12, 0
      %p140 = por %p138, %p139
      %p141 = scmp.ne.s32.totalorder %s130, %s133
      %p142 = scmp.eq.s32.totalorder %s17, 1
      %p143 = por %p141, %p142
      %p144 = scmp.ne.s32.totalorder %s133, %s134
      %p145 = scmp.eq.s32.totalorder %s17, 0
      %p146 = por %p144, %p145
      %p147 = scmp.ne.s32.totalorder %s133, %s134
      %p148 = scmp.eq.s32.totalorder %s18, 1
      %p149 = por %p147, %p148
      %p151 = scmp.ne.s32.totalorder %s134, %s150
      %p152 = scmp.eq.s32.totalorder %s18, 0
      %p153 = por %p151, %p152
      %p154 = scmp.le.s32.totalorder 1, %s12
      %p155 = scmp.lt.s32.totalorder %s12, 3
      %p156 = pnand %p154, %p155
      %p157 = pneg %p156
      // Predicated region
      $region9: #{contrastive_loss.1} parent=5 // pred_check
        _
      $region10: #{contrastive_loss.1} parent=5 // pred_check_branch
        %159 = sbr.rel (%p156) target = $region12
      $region11: #{contrastive_loss.1} parent=5 // pred_region
        %s160 = ssub.s32 %s12, 1
      $region12: #{contrastive_loss.1} parent=5 // pred_fallthru
        _
      %p161 = scmp.lt.s32.totalorder %s12, 2
      // Predicated region
      $region13: #{contrastive_loss.1} parent=5 // pred_check
        %p162 = pneg %p161
      $region14: #{contrastive_loss.1} parent=5 // pred_check_branch
        %164 = sbr.rel (%p162) target = $region16
      $region15: #{contrastive_loss.1} parent=5 // pred_region
        // Predicated region
        $region17: #{contrastive_loss.1} parent=15 // pred_check
          %p165 = pneg %p50
        $region18: #{contrastive_loss.1} parent=15 // pred_check_branch
          %167 = sbr.rel (%p165) target = $region20
        $region19: #{contrastive_loss.1} parent=15 // pred_region
          %s168 = sadd.s32 %s19, %s20
          %p169 = scmp.lt.s32.totalorder %s168, 1
          %s170 = scalar_select %p169, %s168, 1
          %s171 = smul.u32 4, %s170
          %s172 = ssub.s32 7, %s171
          %p173 = scmp.lt.s32.totalorder %s172, 4
          %s174 = scalar_select %p173, %s172, 4
          %s175 = smul.u32 64, %s174
          %s176 = smul.u32 %s175, 2
          %p177 = scmp.lt.s32.totalorder %s171, 6
          %s178 = scalar_select %p177, %s171, 6
          %s179 = smul.addr %s178, 2
          %s180 = smul.addr %s179, 4
          %s181 = scalar_lea.vmem %s0, %s180
          %s182 = sadd.s32 %s19, %s20
          %p183 = scmp.lt.s32.totalorder %s182, 1
          %s184 = scalar_select %p183, %s182, 1
          %s185 = smul.u32 4, %s184
          %s186 = ssub.s32 7, %s185
          %p187 = scmp.lt.s32.totalorder %s186, 4
          %s188 = scalar_select %p187, %s186, 4
          %s189 = smul.u32 64, %s188
          %s190 = smul.u32 %s189, 2
        $region20: #{contrastive_loss.1} parent=15 // pred_fallthru
          _
        // Predicated region
        $region21: #{contrastive_loss.1} parent=15 // pred_check
          %p191 = pneg %p82
        $region22: #{contrastive_loss.1} parent=15 // pred_check_branch
          %193 = sbr.rel (%p191) target = $region24
        $region23: #{contrastive_loss.1} parent=15 // pred_region
          %s194 = sand.u32 %s72, 1
          %s195 = scalar_lea.sflag [#allocation3], %s194
          %s196 = sand.u32 %s72, 1
          %s197 = smul.addr %s196, 32
          %s198 = scalar_lea.vmem [#allocation2], %s197
          %s199 = sadd.s32 %s19, %s20
          %p200 = scmp.lt.s32.totalorder %s199, 1
          %s201 = scalar_select %p200, %s199, 1
          %s202 = smul.u32 4, %s201
          %s203 = ssub.s32 7, %s202
          %p204 = scmp.lt.s32.totalorder %s203, 4
          %s205 = scalar_select %p204, %s203, 4
          %s206 = smul.u32 64, %s205
          %s207 = smul.u32 %s206, 2
          %s209 = ssub.s32 512, %s207
          %210 = vsyncadd %s195, %s209
          %p211 = scmp.ne.s32.totalorder 0, %s207
          %s212 = smul.addr %s202, 2
          %s213 = smul.addr %s212, 64
          %s214 = scalar_lea.hbm %s1, %s213
          %s215 = smul.u32 8, %s205
          %s216 = sshll.u32 %s198, 4
          %s217 = int_to_ptr.vmem [resolvable:$true] %s216
          %s218 = sshll.u32 %s215, 4
          %222 = dma.hbm_to_vmem [thread:$0]  (%p211), %s214, %s218, %s217, %s195, 128, 128, 8
        $region24: #{contrastive_loss.1} parent=15 // pred_fallthru
          _
        // Predicated region
        $region25: #{contrastive_loss.1} parent=15 // pred_check
          %p223 = pneg %p114
        $region26: #{contrastive_loss.1} parent=15 // pred_check_branch
          %225 = sbr.rel (%p223) target = $region28
        $region27: #{contrastive_loss.1} parent=15 // pred_region
          %s226 = sadd.s32 %s19, %s20
          %p227 = scmp.lt.s32.totalorder %s226, 1
          %s228 = scalar_select %p227, %s226, 1
          %s229 = smul.u32 4, %s228
          %s230 = ssub.s32 7, %s229
          %p231 = scmp.lt.s32.totalorder %s230, 4
          %s232 = scalar_select %p231, %s230, 4
          %s233 = smul.u32 128, %s232
          %p234 = scmp.lt.s32.totalorder %s229, 6
          %s235 = scalar_select %p234, %s229, 6
          %s236 = smul.addr %s235, 8
          %s237 = scalar_lea.vmem %s2, %s236
          %s238 = sadd.s32 %s19, %s20
          %p239 = scmp.lt.s32.totalorder %s238, 1
          %s240 = scalar_select %p239, %s238, 1
          %s241 = smul.u32 4, %s240
          %s242 = ssub.s32 7, %s241
          %p243 = scmp.lt.s32.totalorder %s242, 4
          %s244 = scalar_select %p243, %s242, 4
          %s245 = smul.u32 128, %s244
        $region28: #{contrastive_loss.1} parent=15 // pred_fallthru
          _
      $region16: #{contrastive_loss.1} parent=5 // pred_fallthru
        _
      %p246 = scmp.le.s32.totalorder 1, %s12
      %p247 = scmp.lt.s32.totalorder %s12, 3
      %p248 = pnand %p246, %p247
      %p249 = pneg %p248
      // Predicated region
      $region29: #{contrastive_loss.1} parent=5 // pred_check
        _
      $region30: #{contrastive_loss.1} parent=5 // pred_check_branch
        %251 = sbr.rel (%p248) target = $region32
      $region31: #{contrastive_loss.1} parent=5 // pred_region
        %s252 = ssub.s32 %s12, 1
        %s253 = sand.u32 %s75, 1
        %s254 = scalar_lea.sflag [#allocation3], %s253
        %s255 = sand.u32 %s75, 1
        %s256 = smul.addr %s255, 32
        %s257 = scalar_lea.vmem [#allocation2], %s256
        // Predicated region
        $region33: #{contrastive_loss.1} parent=31 // pred_check
          %p258 = pneg %p88
        $region34: #{contrastive_loss.1} parent=31 // pred_check_branch
          %260 = sbr.rel (%p258) target = $region36
        $region35: #{contrastive_loss.1} parent=31 // pred_region
          %261 = dma.done %s254, 512
        $region36: #{contrastive_loss.1} parent=31 // pred_fallthru
          _
        %s262 = sadd.s32 %s21, %s22
        %p263 = scmp.lt.s32.totalorder %s262, 1
        %s264 = scalar_select %p263, %s262, 1
        %s265 = smul.u32 4, %s264
        %s266 = ssub.s32 7, %s265
        %p267 = scmp.lt.s32.totalorder %s266, 4
        %s268 = scalar_select %p267, %s266, 4
        %s269 = smul.u32 64, %s268
        %s270 = smul.u32 %s269, 2
        %p271 = scmp.lt.s32.totalorder %s265, 6
        %s272 = scalar_select %p271, %s265, 6
        %s273 = smul.addr %s272, 2
        %s274 = smul.addr %s273, 4
        %s275 = scalar_lea.vmem %s0, %s274
        %p276 = pneg %p56
        %p277 = pneg %p53
        %s278 = sand.u32 %s75, 1
        %s279 = scalar_lea.sflag [#allocation3], %s278
        %s280 = sand.u32 %s75, 1
        %s281 = smul.addr %s280, 32
        %s282 = scalar_lea.vmem [#allocation2], %s281
        %p283 = pneg %p88
        %p284 = pneg %p85
        %s285 = sadd.s32 %s21, %s22
        %p286 = scmp.lt.s32.totalorder %s285, 1
        %s287 = scalar_select %p286, %s285, 1
        %s288 = smul.u32 4, %s287
        %s289 = ssub.s32 7, %s288
        %p290 = scmp.lt.s32.totalorder %s289, 4
        %s291 = scalar_select %p290, %s289, 4
        %s292 = smul.u32 128, %s291
        %p293 = scmp.lt.s32.totalorder %s288, 6
        %s294 = scalar_select %p293, %s288, 6
        %s295 = smul.addr %s294, 8
        %s296 = scalar_lea.vmem %s2, %s295
        %p297 = pneg %p120
        %p298 = pneg %p117
        %p299 = pneg %p146
        %p300 = pneg %p143
        %p301 = scmp.lt.s32.totalorder %s21, 1
        %s302 = scalar_select %p301, %s21, 1
        %s303 = smul.addr %s302, 8
        %s304 = scalar_lea.vmem %s3, %s303
        %s305 = sadd.s32 %s21, %s22
        %p306 = scmp.lt.s32.totalorder %s305, 1
        %s307 = scalar_select %p306, %s305, 1
        %s308 = smul.u32 4, %s307
        %s309 = ssub.s32 7, %s308
        %p310 = scmp.lt.s32.totalorder %s309, 4
        %s311 = scalar_select %p310, %s309, 4
        %s312 = smul.u32 64, %s311
        %s313 = smul.u32 %s312, 2
        %p314 = scmp.lt.s32.totalorder %s308, 6
        %s315 = scalar_select %p314, %s308, 6
        %s316 = smul.addr %s315, 2
        %s317 = smul.addr %s316, 4
        %s318 = scalar_lea.vmem %s0, %s317
        %s319 = sadd.s32 %s21, %s22
        %p320 = scmp.lt.s32.totalorder %s319, 1
        %s321 = scalar_select %p320, %s319, 1
        %s322 = smul.u32 4, %s321
        %s323 = ssub.s32 7, %s322
        %p324 = scmp.lt.s32.totalorder %s323, 4
        %s325 = scalar_select %p324, %s323, 4
        %s326 = smul.u32 64, %s325
        %s327 = smul.u32 %s326, 2
        %s328 = sadd.s32 %s21, %s22
        %p329 = scmp.lt.s32.totalorder %s328, 1
        %s330 = scalar_select %p329, %s328, 1
        %s331 = smul.u32 4, %s330
        %s332 = ssub.s32 7, %s331
        %p333 = scmp.lt.s32.totalorder %s332, 4
        %s334 = scalar_select %p333, %s332, 4
        %s335 = smul.u32 64, %s334
        %s336 = smul.u32 %s335, 2
        %s337 = sadd.s32 %s21, %s22
        %p338 = scmp.lt.s32.totalorder %s337, 1
        %s339 = scalar_select %p338, %s337, 1
        %s340 = smul.u32 4, %s339
        %s341 = ssub.s32 7, %s340
        %p342 = scmp.lt.s32.totalorder %s341, 4
        %s343 = scalar_select %p342, %s341, 4
        %s344 = smul.u32 128, %s343
        %p345 = scmp.lt.s32.totalorder %s340, 6
        %s346 = scalar_select %p345, %s340, 6
        %s347 = smul.addr %s346, 8
        %s348 = scalar_lea.vmem %s2, %s347
        %s349 = sadd.s32 %s21, %s22
        %p350 = scmp.lt.s32.totalorder %s349, 1
        %s351 = scalar_select %p350, %s349, 1
        %s352 = smul.u32 4, %s351
        %s353 = ssub.s32 7, %s352
        %p354 = scmp.lt.s32.totalorder %s353, 4
        %s355 = scalar_select %p354, %s353, 4
        %s356 = smul.u32 128, %s355
        %p357 = scmp.lt.s32.totalorder %s21, 1
        %s358 = scalar_select %p357, %s21, 1
        %s359 = smul.addr %s358, 8
        %s360 = scalar_lea.vmem %s3, %s359
        %p361 = scmp.eq.s32.totalorder %s22, 0
        // Predicated region
        $region37: #{contrastive_loss.1} parent=31 // pred_check
          %p362 = pneg %p361
        $region38: #{contrastive_loss.1} parent=31 // pred_check_branch
          %364 = sbr.rel (%p362) target = $region40
        $region39: #{contrastive_loss.1} parent=31 // pred_region
          %365 = vst [vmem:[%s360] sm:$0xff] 0.0
        $region40: #{contrastive_loss.1} parent=31 // pred_fallthru
          _
        %v366 = vld [vmem:[%s318] sm:$0xff]
        %v367 = vld [vmem:[%s318 + $0x8] sm:$0xff]
        %v368 = vld [vmem:[%s318 + $0x10] sm:$0xff]
        %v369 = vld [vmem:[%s318 + $0x18] sm:$0xff]
        %v370 = vunpack.c.l.bf16 %v366
        %v371 = vunpack.c.h.bf16 %v366
        %v372 = vunpack.c.l.bf16 %v367
        %v373 = vunpack.c.h.bf16 %v367
        %v374 = vunpack.c.l.bf16 %v368
        %v375 = vunpack.c.h.bf16 %v368
        %v376 = vunpack.c.l.bf16 %v369
        %v377 = vunpack.c.h.bf16 %v369
        %v378 = vld [vmem:[%s257] sm:$0xff]
        %v379 = vld [vmem:[%s257 + $0x8] sm:$0xff]
        %v380 = vld [vmem:[%s257 + $0x10] sm:$0xff]
        %v381 = vld [vmem:[%s257 + $0x18] sm:$0xff]
        %v382 = vunpack.c.l.bf16 %v378
        %v383 = vunpack.c.h.bf16 %v378
        %v384 = vunpack.c.l.bf16 %v379
        %v385 = vunpack.c.h.bf16 %v379
        %v386 = vunpack.c.l.bf16 %v380
        %v387 = vunpack.c.h.bf16 %v380
        %v388 = vunpack.c.l.bf16 %v381
        %v389 = vunpack.c.h.bf16 %v381
        %v390 = vld [vmem:[%s348] sm:$0xff]
        %v391 = vld [vmem:[%s348 + $0x8] sm:$0xff]
        %v392 = vld [vmem:[%s348 + $0x10] sm:$0xff]
        %v393 = vld [vmem:[%s348 + $0x18] sm:$0xff]
        %s394 = sadd.s32 %s21, %s22
        %p395 = scmp.lt.s32.totalorder %s394, 2
        %p396 = scmp.lt.s32.totalorder %s394, 1
        %s397 = scalar_select %p396, %s394, 1
        %s398 = smul.u32 %s397, 32
        %v399 = vlaneseq
        %v400 = vshrl.u32 %v399, 7
        %v401 = vadd.s32 %v400, 8
        %v402 = vadd.s32 %v400, 16
        %v403 = vadd.s32 %v400, 24
        %v404 = vstv %s398
        %v405 = vadd.s32 %v404, %v400
        %v406 = vadd.s32 %v404, %v401
        %v407 = vadd.s32 %v404, %v402
        %v408 = vadd.s32 %v404, %v403
        %vm409 = vcmp.lt.s32.totalorder %v405, 50
        %vm410 = vcmp.lt.s32.totalorder %v406, 50
        %vm411 = vcmp.lt.s32.totalorder %v407, 50
        %vm412 = vcmp.lt.s32.totalorder %v408, 50
        %s413 = scalar_select %p395, 1, 0
        %v414 = vstv %s413
        %vm415 = vcmp.eq.s32.totalorder %v414, 1
        %vm416 = vmand %vm415, %vm409
        %vm417 = vmand %vm415, %vm410
        %vm418 = vmand %vm415, %vm411
        %vm419 = vmand %vm415, %vm412
        %v420 = vsub.f32 %v370, %v382
        %v421 = vsub.f32 %v371, %v383
        %v422 = vsub.f32 %v372, %v384
        %v423 = vsub.f32 %v373, %v385
        %v424 = vsub.f32 %v374, %v386
        %v425 = vsub.f32 %v375, %v387
        %v426 = vsub.f32 %v376, %v388
        %v427 = vsub.f32 %v377, %v389
        %v428 = vadd.f32 %v420, 1e-06
        %v429 = vadd.f32 %v421, 1e-06
        %v430 = vadd.f32 %v422, 1e-06
        %v431 = vadd.f32 %v423, 1e-06
        %v432 = vadd.f32 %v424, 1e-06
        %v433 = vadd.f32 %v425, 1e-06
        %v434 = vadd.f32 %v426, 1e-06
        %v435 = vadd.f32 %v427, 1e-06
        %v436 = vmul.f32 %v428, %v428
        %v437 = vmul.f32 %v429, %v429
        %v438 = vmul.f32 %v430, %v430
        %v439 = vmul.f32 %v431, %v431
        %v440 = vmul.f32 %v432, %v432
        %v441 = vmul.f32 %v433, %v433
        %v442 = vmul.f32 %v434, %v434
        %v443 = vmul.f32 %v435, %v435
        %v444 = vadd.f32 %v436, %v437
        %445 = vadd.xlane.f32.xlu0 %v444
        %v446 = vpop.xlane.xlu0 %445
        %v447 = vadd.f32 %v438, %v439
        %448 = vadd.xlane.f32.xlu0 %v447
        %v449 = vpop.xlane.xlu0 %448
        %v450 = vadd.f32 %v440, %v441
        %451 = vadd.xlane.f32.xlu0 %v450
        %v452 = vpop.xlane.xlu0 %451
        %v453 = vadd.f32 %v442, %v443
        %454 = vadd.xlane.f32.xlu0 %v453
        %v455 = vpop.xlane.xlu0 %454
        %v456 = vrsqrt.pop %v446
        %v457 = vmul.f32 %v446, %v456
        %vm458 = vcmp.eq.f32.partialorder %v446, inf
        %v459 = vsel %vm458, %v446, %v457
        %vm460 = vcmp.eq.f32.partialorder %v446, 0.0
        %v461 = vand.u32 %v446, 2147483648
        %v462 = vsel %vm460, %v461, %v459
        %v463 = vrsqrt.pop %v449
        %v464 = vmul.f32 %v449, %v463
        %vm465 = vcmp.eq.f32.partialorder %v449, inf
        %v466 = vsel %vm465, %v449, %v464
        %vm467 = vcmp.eq.f32.partialorder %v449, 0.0
        %v468 = vand.u32 %v449, 2147483648
        %v469 = vsel %vm467, %v468, %v466
        %v470 = vrsqrt.pop %v452
        %v471 = vmul.f32 %v452, %v470
        %vm472 = vcmp.eq.f32.partialorder %v452, inf
        %v473 = vsel %vm472, %v452, %v471
        %vm474 = vcmp.eq.f32.partialorder %v452, 0.0
        %v475 = vand.u32 %v452, 2147483648
        %v476 = vsel %vm474, %v475, %v473
        %v477 = vrsqrt.pop %v455
        %v478 = vmul.f32 %v455, %v477
        %vm479 = vcmp.eq.f32.partialorder %v455, inf
        %v480 = vsel %vm479, %v455, %v478
        %vm481 = vcmp.eq.f32.partialorder %v455, 0.0
        %v482 = vand.u32 %v455, 2147483648
        %v483 = vsel %vm481, %v482, %v480
        %v484 = vsub.f32 1.0, %v462
        %v485 = vsub.f32 1.0, %v469
        %v486 = vsub.f32 1.0, %v476
        %v487 = vsub.f32 1.0, %v483
        %v488 = vmax.f32 %v484, 0.0
        %v489 = vmax.f32 %v485, 0.0
        %v490 = vmax.f32 %v486, 0.0
        %v491 = vmax.f32 %v487, 0.0
        %v492 = vmul.f32 %v390, %v446
        %v493 = vmul.f32 %v391, %v449
        %v494 = vmul.f32 %v392, %v452
        %v495 = vmul.f32 %v393, %v455
        %v496 = vsub.f32 1.0, %v390
        %v497 = vsub.f32 1.0, %v391
        %v498 = vsub.f32 1.0, %v392
        %v499 = vsub.f32 1.0, %v393
        %v500 = vmul.f32 %v496, %v488
        %v501 = vmul.f32 %v497, %v489
        %v502 = vmul.f32 %v498, %v490
        %v503 = vmul.f32 %v499, %v491
        %v504 = vmul.f32 %v500, %v488
        %v505 = vmul.f32 %v501, %v489
        %v506 = vmul.f32 %v502, %v490
        %v507 = vmul.f32 %v503, %v491
        %v508 = vadd.f32 %v492, %v504
        %v509 = vadd.f32 %v493, %v505
        %v510 = vadd.f32 %v494, %v506
        %v511 = vadd.f32 %v495, %v507
        %v512 = vmul.f32 %v370, %v370
        %v513 = vmul.f32 %v371, %v371
        %v514 = vmul.f32 %v372, %v372
        %v515 = vmul.f32 %v373, %v373
        %v516 = vmul.f32 %v374, %v374
        %v517 = vmul.f32 %v375, %v375
        %v518 = vmul.f32 %v376, %v376
        %v519 = vmul.f32 %v377, %v377
        %v520 = vadd.f32 %v512, %v513
        %521 = vadd.xlane.f32.xlu0 %v520
        %v522 = vpop.xlane.xlu0 %521
        %v523 = vadd.f32 %v514, %v515
        %524 = vadd.xlane.f32.xlu0 %v523
        %v525 = vpop.xlane.xlu0 %524
        %v526 = vadd.f32 %v516, %v517
        %527 = vadd.xlane.f32.xlu0 %v526
        %v528 = vpop.xlane.xlu0 %527
        %v529 = vadd.f32 %v518, %v519
        %530 = vadd.xlane.f32.xlu0 %v529
        %v531 = vpop.xlane.xlu0 %530
        %v532 = vrsqrt.pop %v522
        %v533 = vmul.f32 %v522, %v532
        %vm534 = vcmp.eq.f32.partialorder %v522, inf
        %v535 = vsel %vm534, %v522, %v533
        %vm536 = vcmp.eq.f32.partialorder %v522, 0.0
        %v537 = vand.u32 %v522, 2147483648
        %v538 = vsel %vm536, %v537, %v535
        %v539 = vrsqrt.pop %v525
        %v540 = vmul.f32 %v525, %v539
        %vm541 = vcmp.eq.f32.partialorder %v525, inf
        %v542 = vsel %vm541, %v525, %v540
        %vm543 = vcmp.eq.f32.partialorder %v525, 0.0
        %v544 = vand.u32 %v525, 2147483648
        %v545 = vsel %vm543, %v544, %v542
        %v546 = vrsqrt.pop %v528
        %v547 = vmul.f32 %v528, %v546
        %vm548 = vcmp.eq.f32.partialorder %v528, inf
        %v549 = vsel %vm548, %v528, %v547
        %vm550 = vcmp.eq.f32.partialorder %v528, 0.0
        %v551 = vand.u32 %v528, 2147483648
        %v552 = vsel %vm550, %v551, %v549
        %v553 = vrsqrt.pop %v531
        %v554 = vmul.f32 %v531, %v553
        %vm555 = vcmp.eq.f32.partialorder %v531, inf
        %v556 = vsel %vm555, %v531, %v554
        %vm557 = vcmp.eq.f32.partialorder %v531, 0.0
        %v558 = vand.u32 %v531, 2147483648
        %v559 = vsel %vm557, %v558, %v556
        %v560 = vmul.f32 %v382, %v382
        %v561 = vmul.f32 %v383, %v383
        %v562 = vmul.f32 %v384, %v384
        %v563 = vmul.f32 %v385, %v385
        %v564 = vmul.f32 %v386, %v386
        %v565 = vmul.f32 %v387, %v387
        %v566 = vmul.f32 %v388, %v388
        %v567 = vmul.f32 %v389, %v389
        %v568 = vadd.f32 %v560, %v561
        %569 = vadd.xlane.f32.xlu0 %v568
        %v570 = vpop.xlane.xlu0 %569
        %v571 = vadd.f32 %v562, %v563
        %572 = vadd.xlane.f32.xlu0 %v571
        %v573 = vpop.xlane.xlu0 %572
        %v574 = vadd.f32 %v564, %v565
        %575 = vadd.xlane.f32.xlu0 %v574
        %v576 = vpop.xlane.xlu0 %575
        %v577 = vadd.f32 %v566, %v567
        %578 = vadd.xlane.f32.xlu0 %v577
        %v579 = vpop.xlane.xlu0 %578
        %v580 = vrsqrt.pop %v570
        %v581 = vmul.f32 %v570, %v580
        %vm582 = vcmp.eq.f32.partialorder %v570, inf
        %v583 = vsel %vm582, %v570, %v581
        %vm584 = vcmp.eq.f32.partialorder %v570, 0.0
        %v585 = vand.u32 %v570, 2147483648
        %v586 = vsel %vm584, %v585, %v583
        %v587 = vrsqrt.pop %v573
        %v588 = vmul.f32 %v573, %v587
        %vm589 = vcmp.eq.f32.partialorder %v573, inf
        %v590 = vsel %vm589, %v573, %v588
        %vm591 = vcmp.eq.f32.partialorder %v573, 0.0
        %v592 = vand.u32 %v573, 2147483648
        %v593 = vsel %vm591, %v592, %v590
        %v594 = vrsqrt.pop %v576
        %v595 = vmul.f32 %v576, %v594
        %vm596 = vcmp.eq.f32.partialorder %v576, inf
        %v597 = vsel %vm596, %v576, %v595
        %vm598 = vcmp.eq.f32.partialorder %v576, 0.0
        %v599 = vand.u32 %v576, 2147483648
        %v600 = vsel %vm598, %v599, %v597
        %v601 = vrsqrt.pop %v579
        %v602 = vmul.f32 %v579, %v601
        %vm603 = vcmp.eq.f32.partialorder %v579, inf
        %v604 = vsel %vm603, %v579, %v602
        %vm605 = vcmp.eq.f32.partialorder %v579, 0.0
        %v606 = vand.u32 %v579, 2147483648
        %v607 = vsel %vm605, %v606, %v604
        %v608 = vadd.f32 %v538, %v586
        %v609 = vadd.f32 %v545, %v593
        %v610 = vadd.f32 %v552, %v600
        %v611 = vadd.f32 %v559, %v607
        %v612 = vmul.f32 %v608, 0.01
        %v613 = vmul.f32 %v609, 0.01
        %v614 = vmul.f32 %v610, 0.01
        %v615 = vmul.f32 %v611, 0.01
        %v616 = vadd.f32 %v508, %v612
        %v617 = vadd.f32 %v509, %v613
        %v618 = vadd.f32 %v510, %v614
        %v619 = vadd.f32 %v511, %v615
        %v620 = vsel %vm416, %v616, 0.0
        %v621 = vsel %vm417, %v617, 0.0
        %v622 = vsel %vm418, %v618, 0.0
        %v623 = vsel %vm419, %v619, 0.0
        %v624 = vld [vmem:[%s360] sm:$0xff]
        %vm625 = vcmask 7168
        %v626 = vsel %vm625, %v620, 0.0
        %v627 = vsel %vm625, %v621, 0.0
        %v628 = vadd.f32 %v626, %v627
        %v629 = vsel %vm625, %v622, 0.0
        %v630 = vadd.f32 %v628, %v629
        %v631 = vsel %vm625, %v623, 0.0
        %v632 = vadd.f32 %v630, %v631
        %v633 = vrot.slane %v632, 4
        %v634 = vadd.f32 %v632, %v633
        %v635 = vrot.slane %v634, 2
        %v636 = vadd.f32 %v634, %v635
        %v637 = vrot.slane %v636, 1
        %v638 = vadd.f32 %v636, %v637
        %640 = vset.pattern.permute.xlu0 0
        %641 = vperm.xlu0 %640, %v638
        %v642 = vpop.permute.xlu0 %641
        %v644 = vadd.f32 %v624, %v642
        %645 = vst [vmem:[%s360] sm:$0xff] %v644
        %p646 = scmp.lt.s32.totalorder %s21, 1
        %s647 = scalar_select %p646, %s21, 1
        %s648 = smul.addr %s647, 8
        %s649 = scalar_lea.vmem %s3, %s648
        // Predicated region
        $region41: #{contrastive_loss.1} parent=31 // pred_check
          %p650 = pneg %p143
        $region42: #{contrastive_loss.1} parent=31 // pred_check_branch
          %652 = sbr.rel (%p650) target = $region44
        $region43: #{contrastive_loss.1} parent=31 // pred_region
          _
        $region44: #{contrastive_loss.1} parent=31 // pred_fallthru
          _
      $region32: #{contrastive_loss.1} parent=5 // pred_fallthru
        _
      %p653 = scmp.le.s32.totalorder 2, %s12
      // Predicated region
      $region45: #{contrastive_loss.1} parent=5 // pred_check
        %p654 = pneg %p653
      $region46: #{contrastive_loss.1} parent=5 // pred_check_branch
        %656 = sbr.rel (%p654) target = $region48
      $region47: #{contrastive_loss.1} parent=5 // pred_region
        %s657 = ssub.s32 %s12, 2
        // Predicated region
        $region49: #{contrastive_loss.1} parent=47 // pred_check
          %p658 = pneg %p149
        $region50: #{contrastive_loss.1} parent=47 // pred_check_branch
          %660 = sbr.rel (%p658) target = $region52
        $region51: #{contrastive_loss.1} parent=47 // pred_region
          %p661 = scmp.lt.s32.totalorder %s23, 1
          %s662 = scalar_select %p661, %s23, 1
          %s663 = smul.addr %s662, 8
          %s664 = scalar_lea.vmem %s3, %s663
        $region52: #{contrastive_loss.1} parent=47 // pred_fallthru
          _
      $region48: #{contrastive_loss.1} parent=5 // pred_fallthru
        _
    $region6: #{contrastive_loss.1} parent=1 // loop_footer
      %s16 = sadd.s32 1, %s12
    $region7: #{contrastive_loss.1} parent=1 // loop_footer_branch
      %11 = sbr.rel target = $region3
    $region8: #{contrastive_loss.1} parent=1 // loop_exit
      _
    %665 = vsyncpa [#allocation3], 1
    %s666 = scalar_lea.sflag [#allocation3], 1
    %667 = vsyncpa %s666, 1

</llo_original>
